<compile_context>
chip_gen: v6e
topology: v6e:2x2x1
jax: 0.10.0
libtpu: 0.0.40
codegen_flags: <defaults>
</compile_context>

<pallas_src>
import functools
import math

import jax
import jax.numpy as jnp
from jax.experimental import pallas as pl
from jax.experimental.pallas import tpu as pltpu


# 64 MiB is <= physical VMEM on v5e/v6e (128 MiB) and v7x (64 MiB per TC).
_VMEM_LIMIT = 64 * 1024 * 1024


def _row_tile(m, target=256):
    """Largest multiple-of-8 divisor of m that is <= target, else the full m."""
    best = None
    for cand in range(8, min(m, target) + 1, 8):
        if m % cand == 0:
            best = cand
    return best if best is not None else m


def _hidden_tile(h, target=512):
    """Largest multiple-of-128 divisor of h that is <= target, else the full h."""
    best = None
    for cand in range(128, min(h, target) + 1, 128):
        if h % cand == 0:
            best = cand
    return best if best is not None else h


# -----------------------------------------------------------------------------
# Pallas kernels
# -----------------------------------------------------------------------------

def _matmul_kernel(x_ref, w_ref, o_ref):
    o_ref[...] = jnp.dot(x_ref[...], w_ref[...],
                         preferred_element_type=jnp.float32).astype(o_ref.dtype)


def pallas_matmul(x, w, out_dtype=None):
    """Bias-free x (M,K) @ w (K,N); rows tiled, bf16 MXU inputs, f32 accumulate."""
    M, K = x.shape
    N = w.shape[1]
    out_dtype = out_dtype or x.dtype
    tm = _row_tile(M)
    return pl.pallas_call(
        _matmul_kernel,
        out_shape=jax.ShapeDtypeStruct((M, N), out_dtype),
        grid=(M // tm,),
        in_specs=[pl.BlockSpec((tm, K), lambda i: (i, 0)),
                  pl.BlockSpec((K, N), lambda i: (0, 0))],
        out_specs=pl.BlockSpec((tm, N), lambda i: (i, 0)),
        compiler_params=pltpu.CompilerParams(
            dimension_semantics=("parallel",),
            vmem_limit_bytes=_VMEM_LIMIT),
    )(x, w)


def _layernorm_kernel(x_ref, g_ref, b_ref, o_ref):
    x = x_ref[...].astype(jnp.float32)
    mean = jnp.mean(x, axis=-1, keepdims=True)
    var = jnp.mean(jnp.square(x - mean), axis=-1, keepdims=True)
    y = (x - mean) * jax.lax.rsqrt(var + 1e-5)
    o_ref[...] = (y * g_ref[...] + b_ref[...]).astype(o_ref.dtype)


def pallas_layernorm(x, gamma, beta):
    """Standalone LayerNorm (only used for the visual ln_pre)."""
    shp = x.shape
    D = shp[-1]
    x2 = x.reshape(-1, D)
    M = x2.shape[0]
    tm = _row_tile(M)
    out = pl.pallas_call(
        _layernorm_kernel,
        out_shape=jax.ShapeDtypeStruct((M, D), x.dtype),
        grid=(M // tm,),
        in_specs=[pl.BlockSpec((tm, D), lambda i: (i, 0)),
                  pl.BlockSpec((1, D), lambda i: (0, 0)),
                  pl.BlockSpec((1, D), lambda i: (0, 0))],
        out_specs=pl.BlockSpec((tm, D), lambda i: (i, 0)),
        compiler_params=pltpu.CompilerParams(dimension_semantics=("parallel",)),
    )(x2, gamma.reshape(1, D).astype(jnp.float32),
       beta.reshape(1, D).astype(jnp.float32))
    return out.reshape(shp)


def _ln_linear_bias_kernel(x_ref, g_ref, be_ref, w_ref, b_ref, o_ref):
    x = x_ref[...].astype(jnp.float32)
    mean = jnp.mean(x, axis=-1, keepdims=True)
    var = jnp.mean(jnp.square(x - mean), axis=-1, keepdims=True)
    y = (x - mean) * jax.lax.rsqrt(var + 1e-5) * g_ref[...] + be_ref[...]
    acc = jnp.dot(y.astype(jnp.bfloat16), w_ref[...],
                  preferred_element_type=jnp.float32) + b_ref[...]
    o_ref[...] = acc.astype(o_ref.dtype)


def _ln_linear_nobias_kernel(x_ref, g_ref, be_ref, w_ref, o_ref):
    x = x_ref[...].astype(jnp.float32)
    mean = jnp.mean(x, axis=-1, keepdims=True)
    var = jnp.mean(jnp.square(x - mean), axis=-1, keepdims=True)
    y = (x - mean) * jax.lax.rsqrt(var + 1e-5) * g_ref[...] + be_ref[...]
    o_ref[...] = jnp.dot(y.astype(jnp.bfloat16), w_ref[...],
                         preferred_element_type=jnp.float32).astype(o_ref.dtype)


def pallas_ln_linear(x, gamma, beta, w, b=None, out_dtype=None):
    """Fused LayerNorm(x) @ w (+ b); LN stats in f32, matmul in bf16 on the MXU."""
    M, D = x.shape
    N = w.shape[1]
    out_dtype = out_dtype or x.dtype
    tm = _row_tile(M)
    in_specs = [pl.BlockSpec((tm, D), lambda i: (i, 0)),
                pl.BlockSpec((1, D), lambda i: (0, 0)),
                pl.BlockSpec((1, D), lambda i: (0, 0)),
                pl.BlockSpec((D, N), lambda i: (0, 0))]
    args = [x, gamma.reshape(1, D).astype(jnp.float32),
            beta.reshape(1, D).astype(jnp.float32), w]
    if b is not None:
        in_specs.append(pl.BlockSpec((1, N), lambda i: (0, 0)))
        args.append(b.reshape(1, N).astype(jnp.float32))
        kern = _ln_linear_bias_kernel
    else:
        kern = _ln_linear_nobias_kernel
    return pl.pallas_call(
        kern,
        out_shape=jax.ShapeDtypeStruct((M, N), out_dtype),
        grid=(M // tm,),
        in_specs=in_specs,
        out_specs=pl.BlockSpec((tm, N), lambda i: (i, 0)),
        compiler_params=pltpu.CompilerParams(
            dimension_semantics=("parallel",),
            vmem_limit_bytes=_VMEM_LIMIT),
    )(*args)


def _attn_block_kernel(qkv_ref, wo_ref, bo_ref, res_ref, o_ref, *,
                       heads, scale, causal):
    """All heads of one batch element + output projection + residual add."""
    S = qkv_ref.shape[1]
    D = res_ref.shape[2]
    Dh = D // heads
    if causal:
        row = jax.lax.broadcasted_iota(jnp.int32, (S, S), 0)
        col = jax.lax.broadcasted_iota(jnp.int32, (S, S), 1)
    outs = []
    for h in range(heads):  # static unrolled loop; static ref slices per head
        q = qkv_ref[0, :, h * Dh:(h + 1) * Dh]                  # (S, Dh) bf16
        k = qkv_ref[0, :, D + h * Dh:D + (h + 1) * Dh]
        v = qkv_ref[0, :, 2 * D + h * Dh:2 * D + (h + 1) * Dh]
        s = jax.lax.dot_general(q, k, (((1,), (1,)), ((), ())),
                                preferred_element_type=jnp.float32) * scale
        if causal:
            s = jnp.where(col <= row, s, -1e9)
        s = s - jnp.max(s, axis=-1, keepdims=True)
        p = jnp.exp(s)
        p = p * pl.reciprocal(jnp.sum(p, axis=-1, keepdims=True), approx=True)
        outs.append(jnp.dot(p.astype(v.dtype), v,
                            preferred_element_type=jnp.float32))
    o = jnp.concatenate(outs, axis=-1)                           # (S, D) f32
    proj = jnp.dot(o.astype(jnp.bfloat16), wo_ref[...],
                   preferred_element_type=jnp.float32)
    proj = proj + bo_ref[...] + res_ref[0].astype(jnp.float32)   # fused residual
    o_ref[0] = proj.astype(o_ref.dtype)


def pallas_attn_block(qkv, wo, bo, residual, *, heads, causal):
    B, S, D3 = qkv.shape
    D = residual.shape[2]
    Dh = D // heads
    kern = functools.partial(_attn_block_kernel, heads=heads,
                             scale=1.0 / math.sqrt(Dh), causal=causal)
    return pl.pallas_call(
        kern,
        out_shape=jax.ShapeDtypeStruct((B, S, D), residual.dtype),
        grid=(B,),
        in_specs=[pl.BlockSpec((1, S, D3), lambda b: (b, 0, 0)),
                  pl.BlockSpec((D, D), lambda b: (0, 0)),
                  pl.BlockSpec((1, D), lambda b: (0, 0)),
                  pl.BlockSpec((1, S, D), lambda b: (b, 0, 0))],
        out_specs=pl.BlockSpec((1, S, D), lambda b: (b, 0, 0)),
        compiler_params=pltpu.CompilerParams(
            dimension_semantics=("parallel",),
            vmem_limit_bytes=_VMEM_LIMIT),
    )(qkv, wo, bo.reshape(1, D).astype(jnp.float32), residual)


def _ln_mlp_kernel(x_ref, g_ref, be_ref, w1_ref, b1_ref, w2_ref, b2_ref,
                   o_ref, acc_ref):
    """Fused LN2 -> Linear -> QuickGELU -> Linear -> +residual, tiled over H."""
    hk = pl.program_id(1)

    @pl.when(hk == 0)
    def _():
        acc_ref[...] = jnp.zeros_like(acc_ref)

    x = x_ref[...].astype(jnp.float32)
    mean = jnp.mean(x, axis=-1, keepdims=True)
    var = jnp.mean(jnp.square(x - mean), axis=-1, keepdims=True)
    y = (x - mean) * jax.lax.rsqrt(var + 1e-5) * g_ref[...] + be_ref[...]
    h = jnp.dot(y.astype(jnp.bfloat16), w1_ref[...],
                preferred_element_type=jnp.float32) + b1_ref[...]
    h = h * jax.nn.sigmoid(1.702 * h)                       # QuickGELU (CLIP)
    acc_ref[...] += jnp.dot(h.astype(jnp.bfloat16), w2_ref[...],
                            preferred_element_type=jnp.float32)

    @pl.when(hk == pl.num_programs(1) - 1)
    def _():
        o_ref[...] = (acc_ref[...] + b2_ref[...] + x).astype(o_ref.dtype)


def pallas_ln_mlp_residual(x, gamma, beta, w1, b1, w2, b2):
    M, D = x.shape
    H = w1.shape[1]
    tm = _row_tile(M)
    th = _hidden_tile(H)
    return pl.pallas_call(
        _ln_mlp_kernel,
        out_shape=jax.ShapeDtypeStruct((M, D), x.dtype),
        grid=(M // tm, H // th),
        in_specs=[pl.BlockSpec((tm, D), lambda i, hk: (i, 0)),
                  pl.BlockSpec((1, D), lambda i, hk: (0, 0)),
                  pl.BlockSpec((1, D), lambda i, hk: (0, 0)),
                  pl.BlockSpec((D, th), lambda i, hk: (0, hk)),
                  pl.BlockSpec((1, th), lambda i, hk: (0, hk)),
                  pl.BlockSpec((th, D), lambda i, hk: (hk, 0)),
                  pl.BlockSpec((1, D), lambda i, hk: (0, 0))],
        out_specs=pl.BlockSpec((tm, D), lambda i, hk: (i, 0)),
        scratch_shapes=[pltpu.VMEM((tm, D), jnp.float32)],
        compiler_params=pltpu.CompilerParams(
            dimension_semantics=("parallel", "arbitrary"),
            vmem_limit_bytes=_VMEM_LIMIT),
    )(x, gamma.reshape(1, D).astype(jnp.float32),
       beta.reshape(1, D).astype(jnp.float32),
       w1, b1.reshape(1, H).astype(jnp.float32),
       w2, b2.reshape(1, D).astype(jnp.float32))


def _itc_kernel(img_ref, txt_ref, scale_ref, loss_ref):
    img = img_ref[...].astype(jnp.float32)
    txt = txt_ref[...].astype(jnp.float32)
    img = img * jax.lax.rsqrt(jnp.sum(img * img, axis=-1, keepdims=True) + 1e-6)
    txt = txt * jax.lax.rsqrt(jnp.sum(txt * txt, axis=-1, keepdims=True) + 1e-6)
    scale = scale_ref[0]                                     # SMEM scalar
    # logits_per_text == logits_per_image.T, so one matmul suffices; the
    # text-side CE is the column softmax of the same matrix.
    logits = scale * jax.lax.dot_general(img, txt, (((1,), (1,)), ((), ())),
                                         preferred_element_type=jnp.float32)
    B = logits.shape[0]
    eye = (jax.lax.broadcasted_iota(jnp.int32, (B, B), 0)
           == jax.lax.broadcasted_iota(jnp.int32, (B, B), 1))

    def diag_ce(lg, axis):
        m = jnp.max(lg, axis=axis, keepdims=True)
        lse = jnp.log(jnp.sum(jnp.exp(lg - m), axis=axis, keepdims=True))
        logp = lg - m - lse
        return -jnp.sum(jnp.where(eye, logp, 0.0)) / B

    loss_ref[0, 0] = 0.5 * (diag_ce(logits, 1) + diag_ce(logits, 0))


def pallas_itc_loss(image_features, text_features, logit_scale):
    B, D = image_features.shape
    scale = jnp.asarray(logit_scale, jnp.float32).reshape(1,)
    out = pl.pallas_call(
        _itc_kernel,
        out_shape=jax.ShapeDtypeStruct((1, 1), jnp.float32),
        grid=(1,),
        in_specs=[pl.BlockSpec((B, D), lambda i: (0, 0)),
                  pl.BlockSpec((B, D), lambda i: (0, 0)),
                  pl.BlockSpec(memory_space=pltpu.MemorySpace.SMEM)],
        out_specs=pl.BlockSpec((1, 1), lambda i: (0, 0)),
    )(image_features, text_features, scale)
    return out[0, 0]


# -----------------------------------------------------------------------------
# CLIP building blocks (glue around the kernels)
# -----------------------------------------------------------------------------

def transformer_block(x, blk, heads, causal):
    B, S, D = x.shape
    M = B * S
    # LN1 fused into the QKV projection (removes a (B,S,D) HBM round-trip).
    qkv = pallas_ln_linear(x.reshape(M, D), blk['ln1_g'], blk['ln1_b'],
                           blk['attn_in_w'], blk['attn_in_b'])
    # Attention (all heads, sliced in-kernel) + out-proj + residual, one launch
    # per batch element; no head-major reshape/transpose through HBM.
    x = pallas_attn_block(qkv.reshape(B, S, 3 * D), blk['attn_out_w'],
                          blk['attn_out_b'], x, heads=heads, causal=causal)
    # LN2 + MLP + residual fused, tiled over rows and the hidden dim.
    x = pallas_ln_mlp_residual(x.reshape(M, D), blk['ln2_g'], blk['ln2_b'],
                               blk['mlp_w1'], blk['mlp_b1'],
                               blk['mlp_w2'], blk['mlp_b2']).reshape(B, S, D)
    return x


def encode_image(p, images, cfg):
    # NCHW -> (B*num_patches, C*p*p) patch rows (glue); stride=p conv == matmul.
    B, C, H, W = images.shape
    ph = cfg['patch']
    D = cfg['vis_width']
    gh, gw = H // ph, W // ph
    x = images.reshape(B, C, gh, ph, gw, ph).transpose(0, 2, 4, 1, 3, 5)
    x = x.reshape(B * gh * gw, C * ph * ph).astype(jnp.bfloat16)
    x = pallas_matmul(x, p['conv1_w_mat'])                    # (B*P, D) bf16
    x = x.reshape(B, gh * gw, D)

    cls = jnp.broadcast_to(p['class_embedding'].reshape(1, 1, D), (B, 1, D))
    x = jnp.concatenate([cls, x], axis=1) + p['vis_pos_embed'][None]   # (B,S,D)
    x = pallas_layernorm(x, p['vis_ln_pre_g'], p['vis_ln_pre_b'])

    for blk in p['vis_blocks']:
        x = transformer_block(x, blk, cfg['vis_heads'], causal=False)

    # ln_post is per-token, so gathering CLS first is equivalent; fuse LN + proj.
    return pallas_ln_linear(x[:, 0, :], p['vis_ln_post_g'], p['vis_ln_post_b'],
                            p['vis_proj'], None, out_dtype=jnp.float32)


def encode_text(p, text, cfg):
    B, L = text.shape
    x = p['token_embedding'][text] + p['txt_pos_embed'][None]  # gather (glue)

    for blk in p['txt_blocks']:
        x = transformer_block(x, blk, cfg['txt_heads'], causal=True)

    eot = jnp.argmax(text, axis=-1)                 # CLIP: EOT = highest token id
    feats = x[jnp.arange(B), eot]                   # (B, Dt)
    # ln_final is per-token, so gather-then-LN == LN-then-gather; fuse LN + proj.
    return pallas_ln_linear(feats, p['ln_final_g'], p['ln_final_b'],
                            p['text_projection'], None, out_dtype=jnp.float32)


# -----------------------------------------------------------------------------
# Deterministic parameter init (synthetic "clip_model"); weights bf16, LN/bias f32
# -----------------------------------------------------------------------------

def init_params(key, cfg):
    keys = iter(jax.random.split(key, 256))

    def nrm(shape, std=0.02, dtype=jnp.bfloat16):
        return (std * jax.random.normal(next(keys), shape)).astype(dtype)

    def init_block(D):
        return dict(
            ln1_g=jnp.ones((D,), jnp.float32), ln1_b=jnp.zeros((D,), jnp.float32),
            attn_in_w=nrm((D, 3 * D)), attn_in_b=jnp.zeros((3 * D,), jnp.float32),
            attn_out_w=nrm((D, D)), attn_out_b=jnp.zeros((D,), jnp.float32),
            ln2_g=jnp.ones((D,), jnp.float32), ln2_b=jnp.zeros((D,), jnp.float32),
            mlp_w1=nrm((D, 4 * D)), mlp_b1=jnp.zeros((4 * D,), jnp.float32),
            mlp_w2=nrm((4 * D, D)), mlp_b2=jnp.zeros((D,), jnp.float32),
        )

    D, Dt, E = cfg['vis_width'], cfg['txt_width'], cfg['embed_dim']
    n_patch = (cfg['image_size'] // cfg['patch']) ** 2
    Kp = cfg['channels'] * cfg['patch'] * cfg['patch']
    p = dict(
        logit_scale=jnp.asarray(math.log(1.0 / 0.07), jnp.float32),
        # visual (conv1 weight stored pre-reshaped to its matmul form (C*p*p, D))
        conv1_w_mat=nrm((Kp, D)),
        class_embedding=nrm((D,)),
        vis_pos_embed=nrm((n_patch + 1, D)),
        vis_ln_pre_g=jnp.ones((D,), jnp.float32),
        vis_ln_pre_b=jnp.zeros((D,), jnp.float32),
        vis_blocks=[init_block(D) for _ in range(cfg['vis_layers'])],
        vis_ln_post_g=jnp.ones((D,), jnp.float32),
        vis_ln_post_b=jnp.zeros((D,), jnp.float32),
        vis_proj=nrm((D, E)),
        # text
        token_embedding=nrm((cfg['vocab'], Dt)),
        txt_pos_embed=nrm((cfg['ctx_len'], Dt)),
        txt_blocks=[init_block(Dt) for _ in range(cfg['txt_layers'])],
        ln_final_g=jnp.ones((Dt,), jnp.float32),
        ln_final_b=jnp.zeros((Dt,), jnp.float32),
        text_projection=nrm((Dt, E)),
    )
    return p


# -----------------------------------------------------------------------------
# The module
# -----------------------------------------------------------------------------

class CustomVPTCLIPPallas:
    """JAX/Pallas port of Custom_VPT_CLIP.forward."""

    def __init__(self, loss_names, tau, params, cfg):
        self.current_task = [l.strip() for l in loss_names.split('+')]
        self.tau = tau
        self.params = params
        self.cfg = cfg
        print(f'Training Model with {self.current_task} tasks')

    def __call__(self, batch):
        p = self.params
        ret = {}
        logit_scale = jnp.exp(p['logit_scale'])
        ret['temperature'] = 1.0 / logit_scale
        image_features = encode_image(p, batch['images'], self.cfg)
        text_features = encode_text(p, batch['caption_ids'], self.cfg)
        if 'itc' in self.current_task:
            ret['itc_loss'] = pallas_itc_loss(image_features, text_features,
                                              logit_scale)
        if 'TAL' in self.current_task:
            # TODO(synk): objectives.compute_TAL is not defined in the provided
            # reference code, so its pid-aware loss cannot be reproduced faithfully.
            pass
        return ret


# -----------------------------------------------------------------------------
# Entry point
# -----------------------------------------------------------------------------

if __name__ == "__main__":
    cfg = dict(
        batch=2, channels=3, image_size=32, patch=8,
        vis_width=64, vis_layers=2, vis_heads=4,
        embed_dim=64,
        vocab=128, ctx_len=8, txt_width=64, txt_layers=2, txt_heads=4,
    )
    key = jax.random.PRNGKey(0)
    pkey, ikey, tkey = jax.random.split(key, 3)

    params = init_params(pkey, cfg)
    images = jax.random.normal(
        ikey, (cfg['batch'], cfg['channels'], cfg['image_size'], cfg['image_size']),
        jnp.float32)
    caption_ids = jax.random.randint(
        tkey, (cfg['batch'], cfg['ctx_len']), 1, cfg['vocab'] - 1).astype(jnp.int32)
    caption_ids = caption_ids.at[:, -1].set(cfg['vocab'] - 1)   # EOT = highest id
    pids = jnp.arange(cfg['batch'], dtype=jnp.int32)

    model = CustomVPTCLIPPallas('itc', tau=0.02, params=params, cfg=cfg)
    ret = model({'images': images, 'caption_ids': caption_ids, 'pids': pids})
    jax.block_until_ready(ret)

    assert jnp.isfinite(ret['itc_loss']) and jnp.isfinite(ret['temperature'])
    print("KERNEL_OK")
</pallas_src>

<mosaic_0001>
module attributes {stable_mosaic.version = 11 : i64} {
  func.func @_matmul_kernel(%arg0: i32, %arg1: memref<32x192xbf16, #tpu.memory_space<vmem>>, %arg2: memref<192x64xbf16, #tpu.memory_space<vmem>>, %arg3: memref<32x64xbf16, #tpu.memory_space<vmem>>) attributes {dimension_semantics = [#tpu.dimension_semantics<parallel>], iteration_bounds = array<i64: 1>, scalar_prefetch = 0 : i64, scratch_operands = 0 : i64, tpu.core_type = #tpu.core_type<tc>, window_params = [{transform_indices = @transform_0, window_bounds = array<i64: 32, 192>}, {pipeline_mode = #tpu.pipeline_mode<synchronous>, transform_indices = @transform_1, window_bounds = array<i64: 192, 64>}, {transform_indices = @transform_2, window_bounds = array<i64: 32, 64>}]} {
    %c0 = arith.constant 0 : index
    %c0_0 = arith.constant 0 : index
    %0 = vector.load %arg1[%c0, %c0_0] : memref<32x192xbf16, #tpu.memory_space<vmem>>, vector<32x192xbf16>
    %c0_1 = arith.constant 0 : index
    %c0_2 = arith.constant 0 : index
    %1 = vector.load %arg2[%c0_1, %c0_2] : memref<192x64xbf16, #tpu.memory_space<vmem>>, vector<192x64xbf16>
    %cst = arith.constant dense<0.000000e+00> : vector<32x64xf32>
    %2 = tpu.matmul %0, %1, %cst {dimension_numbers = #tpu.dot_dimension_numbers<[1], [0], [0], [1], [0, 0, 1, 1], [], []>} : vector<32x192xbf16>, vector<192x64xbf16>, vector<32x64xf32> -> vector<32x64xf32>
    %3 = arith.truncf %2 : vector<32x64xf32> to vector<32x64xbf16>
    %c0_3 = arith.constant 0 : index
    %c0_4 = arith.constant 0 : index
    %4 = vector.load %arg3[%c0_3, %c0_4] : memref<32x64xbf16, #tpu.memory_space<vmem>>, vector<32x64xbf16>
    tpu.vector_store %arg3[%c0_3, %c0_4], %3 {strides = array<i32>} : memref<32x64xbf16, #tpu.memory_space<vmem>>, vector<32x64xbf16>,
    return
  }
  func.func @transform_0(%arg0: i32) -> (i32, i32) {
    %c0_i32 = arith.constant 0 : i32
    %c0_i32_0 = arith.constant 0 : i32
    return %arg0, %c0_i32 : i32, i32
  }
  func.func @transform_1(%arg0: i32) -> (i32, i32) {
    %c0_i32 = arith.constant 0 : i32
    %c0_i32_0 = arith.constant 0 : i32
    %c0_i32_1 = arith.constant 0 : i32
    return %c0_i32, %c0_i32_0 : i32, i32
  }
  func.func @transform_2(%arg0: i32) -> (i32, i32) {
    %c0_i32 = arith.constant 0 : i32
    %c0_i32_0 = arith.constant 0 : i32
    return %arg0, %c0_i32 : i32, i32
  }
}

</mosaic_0001>

<llo_original>
// kernel: tpu_custom_call.1
$region0: #{tpu_custom_call.1}
  #allocation0 [shape = 'u32[]', space=smem, size = 0x4, offset = 0x4, fixed_abs, tag = 'smem constant byte address 0x4 - core index']
  #allocation1 [shape = 'u32[144,128]{1,0:T(1,128)}', space=vmem, size = 0x12000, scoped, tag = 'internal scratch']
  %s0 = inlined_call_operand.vmem [shape: bf16[32,192], index: 0, kind: input, shape index: {}]
  %s1 = inlined_call_operand.vmem [shape: bf16[192,64], index: 1, kind: input, shape index: {}]
  %s2 = inlined_call_operand.hbm [shape: bf16[32,64], index: 2, kind: output, shape index: {}]
  %s3 = sld [smem:[#allocation0]]
  $region18: #{tpu_custom_call.1} parent=0
    _
  %s5 = ssub.s32 1, %s3
  %s6 = scalar_select 0, %s5, %s3
  $region1: #{tpu_custom_call.1} parent=0
    #allocation2 [shape = 'u8[8192]{0}', space=vmem, size = 0x2000, scoped, tag = 'output window, operand 0, single buffered']
    #allocation3 [shape = 's32[1]{0}', space=sflag, size = 0x4, scoped, tag = 'scoped memory for tpu_custom_call.1']
    %7 = vsyncpa [#allocation3], 0
    // Predicated region
    $region2: #{tpu_custom_call.1} parent=1 // pred_check
      _
    $region3: #{tpu_custom_call.1} parent=1 // pred_check_branch
      %9 = sbr.rel (0) target = $region5
    $region4: #{tpu_custom_call.1} parent=1 // pred_region
      _
    $region5: #{tpu_custom_call.1} parent=1 // pred_fallthru
      _
    // Predicated region
    $region6: #{tpu_custom_call.1} parent=1 // pred_check
      _
    $region7: #{tpu_custom_call.1} parent=1 // pred_check_branch
      %11 = sbr.rel (0) target = $region9
    $region8: #{tpu_custom_call.1} parent=1 // pred_region
      _
    $region9: #{tpu_custom_call.1} parent=1 // pred_fallthru
      _
    %v13 = vld [vmem:[%s0] sm:$0xff]
    %v14 = vld [vmem:[%s0 + $0x8] sm:$0xff]
    %v15 = vld [vmem:[%s0 + $0x10] sm:$0xff]
    %v16 = vld [vmem:[%s0 + $0x18] sm:$0xff]
    %v17 = vld [vmem:[%s1] sm:$0xf]
    %v18 = vld [vmem:[%s1 + $0x4] sm:$0xf]
    %v19 = vld [vmem:[%s1 + $0x8] sm:$0xf]
    %v20 = vld [vmem:[%s1 + $0xc] sm:$0xf]
    %v21 = vld [vmem:[%s1 + $0x10] sm:$0xf]
    %v22 = vld [vmem:[%s1 + $0x14] sm:$0xf]
    %v23 = vld [vmem:[%s1 + $0x18] sm:$0xf]
    %v24 = vld [vmem:[%s1 + $0x1c] sm:$0xf]
    %v25 = vld [vmem:[%s1 + $0x20] sm:$0xf]
    %v26 = vld [vmem:[%s1 + $0x24] sm:$0xf]
    %v27 = vld [vmem:[%s1 + $0x28] sm:$0xf]
    %v28 = vld [vmem:[%s1 + $0x2c] sm:$0xf]
    %v29 = vld [vmem:[%s1 + $0x30] sm:$0xf]
    %v30 = vld [vmem:[%s1 + $0x34] sm:$0xf]
    %v31 = vld [vmem:[%s1 + $0x38] sm:$0xf]
    %v32 = vld [vmem:[%s1 + $0x3c] sm:$0xf]
    %v33 = vld [vmem:[%s1 + $0x40] sm:$0xf]
    %v34 = vld [vmem:[%s1 + $0x44] sm:$0xf]
    %v35 = vld [vmem:[%s1 + $0x48] sm:$0xf]
    %v36 = vld [vmem:[%s1 + $0x4c] sm:$0xf]
    %v37 = vld [vmem:[%s1 + $0x50] sm:$0xf]
    %v38 = vld [vmem:[%s1 + $0x54] sm:$0xf]
    %v39 = vld [vmem:[%s1 + $0x58] sm:$0xf]
    %v40 = vld [vmem:[%s1 + $0x5c] sm:$0xf]
    %v45 = vunpack.c.l.b16 %v13
    %v46 = vunpack.c.h.b16 %v13
    %v47 = vunpack.c.l.b16 %v14
    %v48 = vunpack.c.h.b16 %v14
    %v49 = vunpack.c.l.b16 %v15
    %v50 = vunpack.c.h.b16 %v15
    %v51 = vunpack.c.l.b16 %v16
    %v52 = vunpack.c.h.b16 %v16
    %v53 = vpack.c.b16 %v47, %v45
    %v54 = vpack.c.b16 %v48, %v46
    %v55 = vpack.c.b16 %v51, %v49
    %v56 = vpack.c.b16 %v52, %v50
    %v83 = vunpack.c.l.b16 %v17
    %v84 = vunpack.c.l.b16 %v18
    %v85 = vunpack.c.l.b16 %v19
    %v86 = vunpack.c.l.b16 %v20
    %v87 = vunpack.c.l.b16 %v21
    %v88 = vunpack.c.l.b16 %v22
    %v89 = vunpack.c.l.b16 %v23
    %v90 = vunpack.c.l.b16 %v24
    %v91 = vunpack.c.l.b16 %v25
    %v92 = vunpack.c.l.b16 %v26
    %v93 = vunpack.c.l.b16 %v27
    %v94 = vunpack.c.l.b16 %v28
    %v95 = vunpack.c.l.b16 %v29
    %v96 = vunpack.c.l.b16 %v30
    %v97 = vunpack.c.l.b16 %v31
    %v98 = vunpack.c.l.b16 %v32
    %v99 = vunpack.c.l.b16 %v33
    %v100 = vunpack.c.l.b16 %v34
    %v101 = vunpack.c.l.b16 %v35
    %v102 = vunpack.c.l.b16 %v36
    %v103 = vunpack.c.l.b16 %v37
    %v104 = vunpack.c.l.b16 %v38
    %v105 = vunpack.c.l.b16 %v39
    %v106 = vunpack.c.l.b16 %v40
    %v107 = vpack.c.b16 %v84, %v83
    %v108 = vpack.c.b16 %v86, %v85
    %v109 = vpack.c.b16 %v88, %v87
    %v110 = vpack.c.b16 %v90, %v89
    %v111 = vpack.c.b16 %v92, %v91
    %v112 = vpack.c.b16 %v94, %v93
    %v113 = vpack.c.b16 %v96, %v95
    %v114 = vpack.c.b16 %v98, %v97
    %v115 = vpack.c.b16 %v100, %v99
    %v116 = vpack.c.b16 %v102, %v101
    %v117 = vpack.c.b16 %v104, %v103
    %v118 = vpack.c.b16 %v106, %v105
    %vm131 = vcmask 523264
    %v133 = vsel %vm131, %v54, 0
    %v136 = vsel %vm131, %v56, 0
    %138 = vmatprep.subr.bf16.mxu0 0
    %139 = vmatpush1.bf16.msra.mxu0 %v114
    %140 = vmatprep.subr.bf16.mxu0 0
    %141 = vmatpush1.bf16.msra.mxu0 %v113
    %142 = vmatprep.subr.bf16.mxu0 0
    %143 = vmatpush1.bf16.msra.mxu0 %v112
    %144 = vmatprep.subr.bf16.mxu0 0
    %145 = vmatpush1.bf16.msra.mxu0 %v111
    %146 = vmatprep.subr.bf16.mxu0 0
    %147 = vmatpush1.bf16.msra.mxu0 %v110
    %148 = vmatprep.subr.bf16.mxu0 0
    %149 = vmatpush1.bf16.msra.mxu0 %v109
    %150 = vmatprep.subr.bf16.mxu0 0
    %151 = vmatpush1.bf16.msra.mxu0 %v108
    %152 = vmatprep.subr.bf16.mxu0 0
    %153 = vmatpush1.bf16.msra.mxu0 %v107
    %154 = vmatprep.subr.bf16.mxu0 0
    %155 = vmatpush2.bf16.msra.mxu0 0
    %156 = vmatprep.subr.bf16.mxu0 0
    %157 = vmatpush2.bf16.msra.mxu0 0
    %158 = vmatprep.subr.bf16.mxu0 0
    %159 = vmatpush2.bf16.msra.mxu0 0
    %160 = vmatprep.subr.bf16.mxu0 0
    %161 = vmatpush2.bf16.msra.mxu0 0
    %162 = vmatprep.subr.bf16.mxu0 0
    %163 = vmatpush2.bf16.msra.mxu0 %v118
    %164 = vmatprep.subr.bf16.mxu0 0
    %165 = vmatpush2.bf16.msra.mxu0 %v117
    %166 = vmatprep.subr.bf16.mxu0 0
    %167 = vmatpush2.bf16.msra.mxu0 %v116
    %168 = vmatprep.subr.bf16.mxu0 0
    %169 = vmatpush2.bf16.msra.mxu0 %v115
    %170 = vmatprep.mubr.bf16.mxu0 %v133
    %171 = vmatmul.mubr.bf16.gmra.mxu0 %v53
    %v172 = vpop.f32.mrf.mxu0
    %v173 = vadd.f32 0.0, %v172
    %v174 = vpop.f32.mrf.mxu0
    %v175 = vpop.f32.mrf.mxu0
    %v176 = vadd.f32 0.0, %v175
    %v177 = vpop.f32.mrf.mxu0
    %178 = vmatprep.mubr.bf16.mxu0 %v136
    %179 = vmatmul.mubr.bf16.gmra.mxu0 %v55
    %v180 = vpop.f32.mrf.mxu0
    %v181 = vadd.f32 0.0, %v180
    %v182 = vpop.f32.mrf.mxu0
    %v183 = vpop.f32.mrf.mxu0
    %v184 = vadd.f32 0.0, %v183
    %v185 = vpop.f32.mrf.mxu0
    %186 = vdwg.mxu0
    %v187 = vpack.c.bf16 %v176, %v173
    %v188 = vpack.c.bf16 %v184, %v181
    %v191 = vunpack.c.l.b16 %v187
    %v192 = vunpack.c.h.b16 %v187
    %v193 = vunpack.c.l.b16 %v188
    %v194 = vunpack.c.h.b16 %v188
    %v195 = vpack.c.b16 %v191, %v191
    %v196 = vpack.c.b16 %v192, %v192
    %v197 = vpack.c.b16 %v193, %v193
    %v198 = vpack.c.b16 %v194, %v194
    %vm203 = vcmask 519168
    %204 = vst.msk [vmem:[#allocation2] sm:$0xf] %vm203, %v195
    %205 = vst.msk [vmem:[#allocation2 + $0x4] sm:$0xf] %vm203, %v196
    %206 = vst.msk [vmem:[#allocation2 + $0x8] sm:$0xf] %vm203, %v197
    %207 = vst.msk [vmem:[#allocation2 + $0xc] sm:$0xf] %vm203, %v198
    // Predicated region
    $region10: #{tpu_custom_call.1} parent=1 // pred_check
      _
    $region11: #{tpu_custom_call.1} parent=1 // pred_check_branch
      %209 = sbr.rel (0) target = $region13
    $region12: #{tpu_custom_call.1} parent=1 // pred_region
      %s211 = ssub.s32 256, 256
      %212 = vsyncadd [#allocation3], %s211
      %s213 = sshll.u32 [#allocation2], 4
      %s214 = int_to_ptr.vmem [resolvable:$true] %s213
      %219 = dma.vmem_to_hbm [thread:$0]  %s214, 256, %s2, [#allocation3], 64, 64, 4
    $region13: #{tpu_custom_call.1} parent=1 // pred_fallthru
      _
    // Predicated region
    $region14: #{tpu_custom_call.1} parent=1 // pred_check
      _
    $region15: #{tpu_custom_call.1} parent=1 // pred_check_branch
      %221 = sbr.rel (0) target = $region17
    $region16: #{tpu_custom_call.1} parent=1 // pred_region
      %222 = dma.done [#allocation3], 256
    $region17: #{tpu_custom_call.1} parent=1 // pred_fallthru
      _
    %223 = vsyncpa [#allocation3], 1

</llo_original>
